<compile_context>
chip_gen: v7x
topology: tpu7x:2x2x1
jax: 0.10.0
libtpu: 0.0.40
codegen_flags: <defaults>
</compile_context>

<pallas_src>
import functools

import jax
import jax.numpy as jnp
from jax.experimental import pallas as pl
from jax.experimental.pallas import tpu as pltpu

_LANE = 128
_SUBLANE = 8
_SOFTPLUS_THRESHOLD = 20.0
# ~512 KiB of f32 compute footprint per grid step (measured elementwise
# kernels already hit ~85% of HBM roofline at 256 KiB-1 MiB tiles).
_TARGET_BLOCK_BYTES_F32 = 512 * 1024
# Below this many input bytes, skip pallas_call entirely (call overhead wins).
_MIN_PALLAS_BYTES = 1 << 20


def _mish_math(x_f32):
    # Fused tanh(softplus(x)):
    #   u = exp(min(x, 20));  tanh(log1p(u)) = u*(u+2) / (u*(u+2) + 2)
    # -> one transcendental (exp) + one divide instead of exp + log1p + tanh.
    # u <= e^20 ~ 4.85e8, so t ~ 2.4e17 stays well inside f32 range. The
    # min(x, 20) clamp reproduces PyTorch's Softplus threshold branch exactly
    # in f32 (tanh saturates to 1.0f well before x = 20).
    u = jnp.exp(jnp.minimum(x_f32, _SOFTPLUS_THRESHOLD))
    t = u * (u + 2.0)
    return t / (t + 2.0)  # exact divide: keeps the 1e-5 tolerance; HBM-bound anyway


def _mish_kernel(x_ref, o_ref):
    o_ref[...] = _mish_math(x_ref[...].astype(jnp.float32)).astype(o_ref.dtype)


@functools.lru_cache(maxsize=1)
def _num_tensorcores() -> int:
    """Best-effort TensorCores-per-chip query.

    Falls back to 2: on 1-TC parts (v5e/v6e) the resulting extra grid split
    costs ~0.35us, while an odd small grid on a 2-TC part (v7x) would idle a
    core for a large fraction of a mem-bound kernel.
    """
    try:
        info = pltpu.get_tpu_info()
        for attr in ("num_cores", "num_tensorcores", "tensorcores_per_chip",
                     "cores_per_chip", "num_cores_per_chip"):
            v = getattr(info, attr, None)
            if isinstance(v, int) and 1 <= v <= 8:
                return v
    except Exception:
        pass
    try:
        v = getattr(jax.devices()[0], "num_cores", None)
        if isinstance(v, int) and 1 <= v <= 8:
            return v
    except Exception:
        pass
    return 2


def _pick_block_rows(rows: int, pack: int, num_cores: int) -> int:
    """Pick a block row count (multiple of the sublane pack, or == rows)."""
    # ~512 KiB of f32 compute footprint per block, rounded down to the pack.
    target_rows = max(pack, (_TARGET_BLOCK_BYTES_F32 // (_LANE * 4)) // pack * pack)
    block_rows = min(rows, target_rows)
    if num_cores <= 1 or rows < 2 * pack:
        return block_rows

    nblk = pl.cdiv(rows, block_rows)
    if nblk % num_cores == 0:
        return block_rows
    if nblk <= 4 * num_cores:
        # Small grid: search (multiples of the pack, descending) for the
        # largest block whose grid count divides evenly across the cores.
        br = max(pack, (block_rows // pack) * pack)
        while br >= pack:
            if pl.cdiv(rows, br) % num_cores == 0:
                return br
            br -= pack
        # Fallback: at least `num_cores` blocks (may stay unbalanced by one).
        return max(pack, min(block_rows, pl.cdiv(pl.cdiv(rows, num_cores), pack) * pack))
    # Large grid: +/-1 block of imbalance is negligible.
    return block_rows


def mish(x: jax.Array, *, min_pallas_bytes: int = _MIN_PALLAS_BYTES,
         donate: bool = False) -> jax.Array:
    """tanh(softplus(x)) elementwise, matching nn.Sequential(Softplus(), Tanh())."""
    orig_shape = x.shape
    orig_dtype = x.dtype
    n = x.size
    if n == 0:
        return x

    itemsize = jnp.dtype(orig_dtype).itemsize

    # Small-input fast path: let XLA fuse the (identical) math into the
    # producing op; DDPG-sized activations are dominated by call overhead.
    if n * itemsize < min_pallas_bytes:
        return _mish_math(x.astype(jnp.float32)).astype(orig_dtype)

    # Sublane packing: 8 rows for 4-byte, 16 for 2-byte, 32 for 1-byte dtypes.
    pack = _SUBLANE * max(1, 4 // max(1, itemsize))

    flat = x.reshape(-1)
    # Pad only when lane-ragged (n % 128 != 0). Sublane raggedness is handled
    # by the non-divisible grid's masked last block — no full-array pad pass.
    n_lanes = pl.cdiv(n, _LANE) * _LANE
    lane_padded = n_lanes != n
    if lane_padded:
        flat = jnp.pad(flat, (0, n_lanes - n))

    rows = n_lanes // _LANE
    x2d = flat.reshape(rows, _LANE)

    num_cores = _num_tensorcores()
    block_rows = _pick_block_rows(rows, pack, num_cores)
    grid = (pl.cdiv(rows, block_rows),)  # non-divisible grid: last block masked

    cost = pl.CostEstimate(
        flops=6 * n,
        transcendentals=n,
        bytes_accessed=2 * n * itemsize,
    )

    # TODO(synk): verify "parallel" shards this 1-D grid across both v7x
    # TensorCores; if not, switch to pltpu.CORE_PARALLEL / pl.core_map.
    out2d = pl.pallas_call(
        _mish_kernel,
        out_shape=jax.ShapeDtypeStruct((rows, _LANE), orig_dtype),
        grid_spec=pltpu.PrefetchScalarGridSpec(
            num_scalar_prefetch=0,
            grid=grid,
            in_specs=[pl.BlockSpec((block_rows, _LANE), lambda i: (i, 0))],
            out_specs=pl.BlockSpec((block_rows, _LANE), lambda i: (i, 0)),
        ),
        compiler_params=pltpu.CompilerParams(
            dimension_semantics=("parallel",),
        ),
        cost_estimate=cost,
        input_output_aliases=({0: 0} if donate else {}),
    )(x2d)

    out_flat = out2d.reshape(-1)
    if lane_padded:
        out_flat = out_flat[:n]
    return out_flat.reshape(orig_shape)


def _mish_ref(x):
    """Pure-JAX reference matching PyTorch Softplus(beta=1, threshold=20) -> Tanh."""
    xf = x.astype(jnp.float32)
    sp = jnp.where(xf > _SOFTPLUS_THRESHOLD, xf,
                   jnp.log1p(jnp.exp(jnp.minimum(xf, _SOFTPLUS_THRESHOLD))))
    return jnp.tanh(sp).astype(x.dtype)


if __name__ == "__main__":
    key = jax.random.PRNGKey(0)
    k0, k1, k2, k3 = jax.random.split(key, 4)

    # 1) DDPG-sized activation, f32 — takes the small-input fast path.
    x_small = jax.random.normal(k0, (2, 4, 16, 16), dtype=jnp.float32) * 5.0
    y_small = mish(x_small)
    jax.block_until_ready(y_small)
    assert y_small.shape == x_small.shape and y_small.dtype == x_small.dtype
    assert jnp.allclose(y_small, _mish_ref(x_small), atol=1e-5, rtol=1e-5), "fast path mismatch"

    # 1b) Same input forced through the Pallas kernel.
    y_small_p = mish(x_small, min_pallas_bytes=0)
    jax.block_until_ready(y_small_p)
    assert jnp.allclose(y_small_p, _mish_ref(x_small), atol=1e-5, rtol=1e-5), "pallas small mismatch"

    # 2) Larger f32 tensor: natural multi-block Pallas path (above threshold).
    x_big = jax.random.normal(k1, (1024, 1024), dtype=jnp.float32) * 10.0
    y_big = mish(x_big)
    jax.block_until_ready(y_big)
    assert jnp.allclose(y_big, _mish_ref(x_big), atol=1e-5, rtol=1e-5), "pallas big mismatch"

    # 3) Ragged size forced through Pallas: exercises the pad-to-128 lane path.
    x_rag = jax.random.normal(k2, (3, 7, 5), dtype=jnp.float32) * 10.0
    y_rag = mish(x_rag, min_pallas_bytes=0)
    jax.block_until_ready(y_rag)
    assert jnp.allclose(y_rag, _mish_ref(x_rag), atol=1e-5, rtol=1e-5), "ragged mismatch"

    # 4) bfloat16 I/O forced through Pallas (16-sublane packing path).
    x_bf = (jax.random.normal(k3, (2, 4, 16, 16)) * 5.0).astype(jnp.bfloat16)
    y_bf = mish(x_bf, min_pallas_bytes=0)
    jax.block_until_ready(y_bf)
    assert y_bf.dtype == jnp.bfloat16
    assert jnp.allclose(y_bf.astype(jnp.float32), _mish_ref(x_bf).astype(jnp.float32),
                        atol=1e-2, rtol=1e-2), "bf16 mismatch"

    print("KERNEL_OK")
</pallas_src>

<mosaic_0001>
module attributes {stable_mosaic.version = 11 : i64} {
  func.func @_mish_kernel(%arg0: i32, %arg1: memref<8x128xf32, #tpu.memory_space<vmem>>, %arg2: memref<8x128xf32, #tpu.memory_space<vmem>>) attributes {dimension_semantics = [#tpu.dimension_semantics<parallel>], iteration_bounds = array<i64: 2>, scalar_prefetch = 0 : i64, scratch_operands = 0 : i64, tpu.core_type = #tpu.core_type<tc>, window_params = [{transform_indices = @transform_0, window_bounds = array<i64: 8, 128>}, {transform_indices = @transform_1, window_bounds = array<i64: 8, 128>}]} {
    %c0 = arith.constant 0 : index
    %c0_0 = arith.constant 0 : index
    %0 = vector.load %arg1[%c0, %c0_0] : memref<8x128xf32, #tpu.memory_space<vmem>>, vector<8x128xf32>
    %cst = arith.constant 2.000000e+01 : f32
    %1 = vector.broadcast %cst : f32 to vector<8x128xf32>
    %2 = arith.minimumf %0, %1 : vector<8x128xf32>
    %3 = math.exp %2 : vector<8x128xf32>
    %cst_1 = arith.constant 2.000000e+00 : f32
    %4 = vector.broadcast %cst_1 : f32 to vector<8x128xf32>
    %5 = arith.addf %3, %4 : vector<8x128xf32>
    %6 = arith.mulf %3, %5 : vector<8x128xf32>
    %cst_2 = arith.constant 2.000000e+00 : f32
    %7 = vector.broadcast %cst_2 : f32 to vector<8x128xf32>
    %8 = arith.addf %6, %7 : vector<8x128xf32>
    %9 = arith.divf %6, %8 : vector<8x128xf32>
    %c0_3 = arith.constant 0 : index
    %c0_4 = arith.constant 0 : index
    %10 = vector.load %arg2[%c0_3, %c0_4] : memref<8x128xf32, #tpu.memory_space<vmem>>, vector<8x128xf32>
    tpu.vector_store %arg2[%c0_3, %c0_4], %9 {strides = array<i32>} : memref<8x128xf32, #tpu.memory_space<vmem>>, vector<8x128xf32>,
    return
  }
  func.func @transform_0(%arg0: i32) -> (i32, i32) {
    %c0_i32 = arith.constant 0 : i32
    %c0_i32_0 = arith.constant 0 : i32
    return %arg0, %c0_i32 : i32, i32
  }
  func.func @transform_1(%arg0: i32) -> (i32, i32) {
    %c0_i32 = arith.constant 0 : i32
    %c0_i32_0 = arith.constant 0 : i32
    return %arg0, %c0_i32 : i32, i32
  }
}

</mosaic_0001>

<llo_original>
// kernel: tpu_custom_call.1
$region0: #{tpu_custom_call.1}
  #allocation0 [shape = 'u32[]', space=smem, size = 0x4, offset = 0x4, fixed_abs, tag = 'smem constant byte address 0x4 - core index']
  #allocation1 [shape = 'u32[144,128]{1,0:T(1,128)}', space=vmem, size = 0x12000, scoped, tag = 'internal scratch']
  %s0 = inlined_call_operand.hbm [shape: f32[16,128], index: 0, kind: input, shape index: {}]
  %s1 = inlined_call_operand.hbm [shape: f32[16,128], index: 1, kind: output, shape index: {}]
  %s2 = sld [smem:[#allocation0]]
  $region41: #{tpu_custom_call.1} parent=0
    _
  %s4 = ssub.s32 1, %s2
  %s5 = scalar_select 0, %s4, %s2
  $region1: #{tpu_custom_call.1} parent=0
    #allocation2 [shape = 'u8[8192]{0}', space=vmem, size = 0x2000, scoped, tag = 'input window, operand 0']
    #allocation3 [shape = 's32[2]{0}', space=sflag, size = 0x8, scoped, tag = 'scoped memory for tpu_custom_call.1']
    #allocation4 [shape = 's32[2]{0}', space=sflag, size = 0x8, scoped, tag = 'scoped memory for tpu_custom_call.1']
    #allocation5 [shape = 'u8[8192]{0}', space=vmem, size = 0x2000, scoped, tag = 'output window, operand 0']
    %6 = vsyncpa [#allocation3], 0
    %s7 = scalar_lea.sflag [#allocation3], 1
    %8 = vsyncpa %s7, 0
    %9 = vsyncpa [#allocation4], 0
    %s10 = scalar_lea.sflag [#allocation4], 1
    %11 = vsyncpa %s10, 0
    loop: start=0, step=1, limit=4
    $region2: #{tpu_custom_call.1} parent=1 // loop_pre_header
      _
    $region3: #{tpu_custom_call.1} parent=1 // loop_header
      %s13 = sphi 0, %s17
      %p14 = scmp.ge.s32.totalorder %s13, 4
      %s23 = sphi 0, %s25
      %s26 = sphi 0, %s23
      %s27 = sphi 0, %s26
      %s43 = sphi 0, %s27
      %s49 = sphi 0, %s51
      %s52 = sphi 0, %s49
      %s53 = sphi 0, %s52
      %s69 = sphi 0, %s53
    $region4: #{tpu_custom_call.1} parent=1 // loop_header_branch
      %16 = sbr.rel (%p14) target = $region8
    $region5: #{tpu_custom_call.1} parent=1 // loop_body
      %s18 = ssub.s32 %s13, 1
      %s19 = ssub.s32 %s13, 2
      %s20 = sadd.s32 %s13, 1
      %s21 = ssub.s32 %s13, %s20
      %p22 = scmp.eq.s32.totalorder %s21, 0
      %s24 = sadd.s32 %s23, 1
      %s25 = scalar_select %p22, %s23, %s24
      %p28 = pneg %p22
      %p29 = scmp.eq.s32.totalorder %s13, 1
      %p30 = por %p28, %p29
      %p31 = scmp.ne.s32.totalorder %s23, %s26
      %p32 = scmp.eq.s32.totalorder %s13, 0
      %p33 = por %p31, %p32
      %p34 = scmp.ne.s32.totalorder %s23, %s26
      %p35 = scmp.eq.s32.totalorder %s18, 1
      %p36 = por %p34, %p35
      %p37 = scmp.ne.s32.totalorder %s26, %s27
      %p38 = scmp.eq.s32.totalorder %s18, 0
      %p39 = por %p37, %p38
      %p40 = scmp.ne.s32.totalorder %s26, %s27
      %p41 = scmp.eq.s32.totalorder %s19, 1
      %p42 = por %p40, %p41
      %p44 = scmp.ne.s32.totalorder %s27, %s43
      %p45 = scmp.eq.s32.totalorder %s19, 0
      %p46 = por %p44, %p45
      %s47 = ssub.s32 %s13, %s20
      %p48 = scmp.eq.s32.totalorder %s47, 0
      %s50 = sadd.s32 %s49, 1
      %s51 = scalar_select %p48, %s49, %s50
      %p54 = pneg %p48
      %p55 = scmp.eq.s32.totalorder %s13, 1
      %p56 = por %p54, %p55
      %p57 = scmp.ne.s32.totalorder %s49, %s52
      %p58 = scmp.eq.s32.totalorder %s13, 0
      %p59 = por %p57, %p58
      %p60 = scmp.ne.s32.totalorder %s49, %s52
      %p61 = scmp.eq.s32.totalorder %s18, 1
      %p62 = por %p60, %p61
      %p63 = scmp.ne.s32.totalorder %s52, %s53
      %p64 = scmp.eq.s32.totalorder %s18, 0
      %p65 = por %p63, %p64
      %p66 = scmp.ne.s32.totalorder %s52, %s53
      %p67 = scmp.eq.s32.totalorder %s19, 1
      %p68 = por %p66, %p67
      %p70 = scmp.ne.s32.totalorder %s53, %s69
      %p71 = scmp.eq.s32.totalorder %s19, 0
      %p72 = por %p70, %p71
      %p73 = scmp.le.s32.totalorder 1, %s13
      %p74 = scmp.lt.s32.totalorder %s13, 3
      %p75 = pnand %p73, %p74
      %p76 = pneg %p75
      // Predicated region
      $region9: #{tpu_custom_call.1} parent=5 // pred_check
        _
      $region10: #{tpu_custom_call.1} parent=5 // pred_check_branch
        %78 = sbr.rel (%p75) target = $region12
      $region11: #{tpu_custom_call.1} parent=5 // pred_region
        %s79 = ssub.s32 %s13, 1
      $region12: #{tpu_custom_call.1} parent=5 // pred_fallthru
        _
      %p80 = scmp.lt.s32.totalorder %s13, 2
      // Predicated region
      $region13: #{tpu_custom_call.1} parent=5 // pred_check
        %p81 = pneg %p80
      $region14: #{tpu_custom_call.1} parent=5 // pred_check_branch
        %83 = sbr.rel (%p81) target = $region16
      $region15: #{tpu_custom_call.1} parent=5 // pred_region
        // Predicated region
        $region17: #{tpu_custom_call.1} parent=15 // pred_check
          %p84 = pneg %p33
        $region18: #{tpu_custom_call.1} parent=15 // pred_check_branch
          %86 = sbr.rel (%p84) target = $region20
        $region19: #{tpu_custom_call.1} parent=15 // pred_region
          %s87 = sand.u32 %s23, 1
          %s88 = scalar_lea.sflag [#allocation3], %s87
          %s89 = sand.u32 %s23, 1
          %s90 = smul.addr %s89, 8
          %s91 = scalar_lea.vmem [#allocation2], %s90
          %s93 = ssub.s32 128, 128
          %94 = vsyncadd %s88, %s93
          %s95 = smul.addr %s13, 128
          %s96 = scalar_lea.hbm %s0, %s95
          %s98 = sshll.u32 %s91, 4
          %s99 = int_to_ptr.vmem [resolvable:$true] %s98
          %101 = dma.hbm_to_vmem [thread:$0]  %s96, 128, %s99, %s88
        $region20: #{tpu_custom_call.1} parent=15 // pred_fallthru
          _
      $region16: #{tpu_custom_call.1} parent=5 // pred_fallthru
        _
      %p102 = scmp.le.s32.totalorder 1, %s13
      %p103 = scmp.lt.s32.totalorder %s13, 3
      %p104 = pnand %p102, %p103
      %p105 = pneg %p104
      // Predicated region
      $region21: #{tpu_custom_call.1} parent=5 // pred_check
        _
      $region22: #{tpu_custom_call.1} parent=5 // pred_check_branch
        %107 = sbr.rel (%p104) target = $region24
      $region23: #{tpu_custom_call.1} parent=5 // pred_region
        %s108 = ssub.s32 %s13, 1
        %s109 = sand.u32 %s26, 1
        %s110 = scalar_lea.sflag [#allocation3], %s109
        %s111 = sand.u32 %s26, 1
        %s112 = smul.addr %s111, 8
        %s113 = scalar_lea.vmem [#allocation2], %s112
        // Predicated region
        $region25: #{tpu_custom_call.1} parent=23 // pred_check
          %p114 = pneg %p39
        $region26: #{tpu_custom_call.1} parent=23 // pred_check_branch
          %116 = sbr.rel (%p114) target = $region28
        $region27: #{tpu_custom_call.1} parent=23 // pred_region
          %117 = dma.done %s110, 128
        $region28: #{tpu_custom_call.1} parent=23 // pred_fallthru
          _
        %s118 = sand.u32 %s26, 1
        %s119 = scalar_lea.sflag [#allocation3], %s118
        %s120 = sand.u32 %s26, 1
        %s121 = smul.addr %s120, 8
        %s122 = scalar_lea.vmem [#allocation2], %s121
        %p123 = pneg %p39
        %p124 = pneg %p36
        %p125 = pneg %p65
        %p126 = pneg %p62
        %s127 = sand.u32 %s52, 1
        %s128 = scalar_lea.sflag [#allocation4], %s127
        %s129 = sand.u32 %s52, 1
        %s130 = smul.addr %s129, 8
        %s131 = scalar_lea.vmem [#allocation5], %s130
        %v132 = vld [vmem:[%s113] sm:$0xff]
        %v133 = vmin.f32 %v132, 20.0
        %v134 = vmul.f32 %v133, 1.442695
        %v135 = vpow.pop %v134
        %v136 = vadd.f32 %v135, 2.0
        %v137 = vmul.f32 %v135, %v136
        %v138 = vadd.f32 %v137, 2.0
        %v139 = vrcp.pop %v138
        %v140 = vmul.f32 %v137, %v139
        %141 = vst [vmem:[%s131] sm:$0xff] %v140
        %s142 = sand.u32 %s52, 1
        %s143 = scalar_lea.sflag [#allocation4], %s142
        %s144 = sand.u32 %s52, 1
        %s145 = smul.addr %s144, 8
        %s146 = scalar_lea.vmem [#allocation5], %s145
        // Predicated region
        $region29: #{tpu_custom_call.1} parent=23 // pred_check
          %p147 = pneg %p62
        $region30: #{tpu_custom_call.1} parent=23 // pred_check_branch
          %149 = sbr.rel (%p147) target = $region32
        $region31: #{tpu_custom_call.1} parent=23 // pred_region
          %s151 = ssub.s32 128, 128
          %152 = vsyncadd %s143, %s151
          %s153 = smul.addr %s18, 128
          %s154 = scalar_lea.hbm %s1, %s153
          %s156 = sshll.u32 %s146, 4
          %s157 = int_to_ptr.vmem [resolvable:$true] %s156
          %159 = dma.vmem_to_hbm [thread:$0]  %s157, 128, %s154, %s143
        $region32: #{tpu_custom_call.1} parent=23 // pred_fallthru
          _
      $region24: #{tpu_custom_call.1} parent=5 // pred_fallthru
        _
      %p160 = scmp.le.s32.totalorder 2, %s13
      // Predicated region
      $region33: #{tpu_custom_call.1} parent=5 // pred_check
        %p161 = pneg %p160
      $region34: #{tpu_custom_call.1} parent=5 // pred_check_branch
        %163 = sbr.rel (%p161) target = $region36
      $region35: #{tpu_custom_call.1} parent=5 // pred_region
        %s164 = ssub.s32 %s13, 2
        // Predicated region
        $region37: #{tpu_custom_call.1} parent=35 // pred_check
          %p165 = pneg %p68
        $region38: #{tpu_custom_call.1} parent=35 // pred_check_branch
          %167 = sbr.rel (%p165) target = $region40
        $region39: #{tpu_custom_call.1} parent=35 // pred_region
          %s168 = sand.u32 %s53, 1
          %s169 = scalar_lea.sflag [#allocation4], %s168
          %s170 = sand.u32 %s53, 1
          %s171 = smul.addr %s170, 8
          %s172 = scalar_lea.vmem [#allocation5], %s171
          %173 = dma.done %s169, 128
        $region40: #{tpu_custom_call.1} parent=35 // pred_fallthru
          _
      $region36: #{tpu_custom_call.1} parent=5 // pred_fallthru
        _
    $region6: #{tpu_custom_call.1} parent=1 // loop_footer
      %s17 = sadd.s32 1, %s13
    $region7: #{tpu_custom_call.1} parent=1 // loop_footer_branch
      %12 = sbr.rel target = $region3
    $region8: #{tpu_custom_call.1} parent=1 // loop_exit
      _
    %174 = vsyncpa [#allocation3], 1
    %s175 = scalar_lea.sflag [#allocation3], 1
    %176 = vsyncpa %s175, 1
    %177 = vsyncpa [#allocation4], 1
    %s178 = scalar_lea.sflag [#allocation4], 1
    %179 = vsyncpa %s178, 1

</llo_original>
